<compile_context>
chip_gen: v7x
topology: tpu7x:2x2x1
jax: 0.10.0
libtpu: 0.0.40
codegen_flags: <defaults>
</compile_context>

<pallas_src>
import functools

import jax
import jax.numpy as jnp
import numpy as np
from jax.experimental import pallas as pl
from jax.experimental.pallas import tpu as pltpu

_LANES = 128
_SUBLANES = 8


def _ce_pixel_kernel(*refs, tile_rows, steps, n_blocks, n_elem, has_pwl):
    """Per-tile weighted BCE-with-logits, accumulated into a (tile_rows,128) slab."""
    if has_pwl:
        pred_ref, gt_ref, pwl_ref, out_ref = refs
    else:
        pred_ref, gt_ref, out_ref = refs
        pwl_ref = None

    c = pl.program_id(0)  # parallel split (megacore axis)
    k = pl.program_id(1)  # reduction steps within the split

    @pl.when(k == 0)
    def _init():
        out_ref[...] = jnp.zeros(out_ref.shape, out_ref.dtype)

    # Validity mask for (a) the padded ragged tail and (b) grid steps whose
    # logical block index falls past the end (their input index is clamped in
    # the index_map, but the mask below is computed from the UNCLAMPED index,
    # so they contribute exactly 0).
    blk = c * steps + k
    row0 = blk * tile_rows
    sub = jax.lax.broadcasted_iota(jnp.int32, (tile_rows, _LANES), 0)
    lane = jax.lax.broadcasted_iota(jnp.int32, (tile_rows, _LANES), 1)
    flat_idx = (row0 + sub) * _LANES + lane
    valid = flat_idx < n_elem

    # Load native dtype, upcast on the VPU (cheap; keeps HBM bytes narrow).
    x = pred_ref[...].astype(jnp.float32)  # logits
    y = gt_ref[...].astype(jnp.float32)    # targets in {0, 1}
    # Keep garbage from partial blocks finite before the transcendentals.
    x = jnp.where(valid, x, 0.0)
    y = jnp.where(valid, y, 0.0)

    if has_pwl:
        w = pwl_ref[...].astype(jnp.float32)
        w = jnp.where(valid, w, 0.0)
        # pwl[ground_truth > 0.5] += 2 ; loss *= (pwl + 1)
        weight = w + 2.0 * (y > 0.5).astype(jnp.float32) + 1.0
    else:
        # pwl defaults to ones and the +=2 update is skipped -> (pwl + 1) == 2
        weight = 2.0

    # Numerically-stable BCEWithLogitsLoss(reduction='none'):
    #   max(x, 0) - x*y + log(1 + exp(-|x|))
    bce = jnp.maximum(x, 0.0) - x * y + jnp.log1p(jnp.exp(-jnp.abs(x)))
    loss = jnp.where(valid, bce * weight, 0.0)

    out_ref[...] += loss


def cross_entropy_pixel(predicted, ground_truth, pwl=None, *,
                        tile_rows=1024, num_splits=2, validate=False):
    """JAX/Pallas equivalent of cross_entropy(method='pixel').forward(...)."""
    if validate:
        # Original module raises on an all-foreground mask. Host sync -> off by
        # default for performance; enable when you need the exact torch behavior.
        if not bool(jax.device_get(jnp.any(ground_truth == 0))):
            raise ValueError(
                "There are no background pixels in mask.\n\t(mask==0).sum() == 0 -> True"
            )

    # --- crop_to_identical_size ---------------------------------------------
    has_pwl = pwl is not None
    shapes = [predicted.shape, ground_truth.shape]
    if has_pwl:
        shapes.append(pwl.shape)
    ndim = len(predicted.shape)
    min_shape = tuple(min(s[d] for s in shapes) for d in range(ndim))

    def crop(t):
        return t[tuple(slice(0, m) for m in min_shape)]

    predicted = crop(predicted)
    ground_truth = crop(ground_truth)
    if has_pwl:
        pwl = crop(pwl)

    n_elem = int(np.prod(min_shape))
    assert n_elem > 0
    assert n_elem < 2 ** 31, "flat int32 index in the kernel would overflow"

    # --- present lane-dense [rows, 128] slabs (native dtype, minimal pad) ----
    block_elems = _SUBLANES * _LANES
    pad = (-n_elem) % block_elems
    # TODO(synk): the pad copy (and the relayout implied by the flattening
    # reshape) could be removed entirely with a manual-DMA (pl.ANY) design.

    def as_slab(t):
        flat = t.reshape(-1)
        if pad:
            flat = jnp.pad(flat, (0, pad))  # pad values are masked in-kernel
        return flat.reshape(-1, _LANES)

    inputs = [as_slab(predicted), as_slab(ground_truth)]
    if has_pwl:
        inputs.append(as_slab(pwl))

    rows = inputs[0].shape[0]                      # multiple of 8
    assert tile_rows % _SUBLANES == 0 and tile_rows > 0
    tile_rows_eff = min(tile_rows, rows)
    n_blocks = (rows + tile_rows_eff - 1) // tile_rows_eff
    steps = (n_blocks + num_splits - 1) // num_splits
    grid = (num_splits, steps)

    def in_map(c, k):
        # Clamp so we never DMA a fully out-of-bounds block; the in-kernel mask
        # (computed from the unclamped index) zeroes any duplicated work.
        return (jnp.minimum(c * steps + k, n_blocks - 1), 0)

    in_specs = [pl.BlockSpec((tile_rows_eff, _LANES), in_map) for _ in inputs]
    out_spec = pl.BlockSpec((None, tile_rows_eff, _LANES), lambda c, k: (c, 0, 0))

    kernel = functools.partial(
        _ce_pixel_kernel,
        tile_rows=tile_rows_eff, steps=steps, n_blocks=n_blocks,
        n_elem=n_elem, has_pwl=has_pwl)

    bytes_in = sum(int(np.prod(t.shape)) * t.dtype.itemsize for t in inputs)
    bytes_out = num_splits * tile_rows_eff * _LANES * 4
    cost = pl.CostEstimate(
        flops=8 * n_elem,
        transcendentals=2 * n_elem,          # exp + log1p per element
        bytes_accessed=bytes_in + bytes_out)

    partials = pl.pallas_call(
        kernel,
        out_shape=jax.ShapeDtypeStruct((num_splits, tile_rows_eff, _LANES),
                                       jnp.float32),
        grid=grid,
        in_specs=in_specs,
        out_specs=out_spec,
        compiler_params=pltpu.CompilerParams(
            dimension_semantics=("parallel", "arbitrary"),
        ),
        cost_estimate=cost,
    )(*inputs)

    # Final cross-lane/sublane reduce + mean over the original pixel count.
    return jnp.sum(partials) / jnp.float32(n_elem)


def _reference(predicted, ground_truth, pwl=None):
    """Plain-JAX reference for sanity checking (method='pixel')."""
    x = predicted.astype(jnp.float32)
    y = ground_truth.astype(jnp.float32)
    if pwl is None:
        w = jnp.ones_like(x)
    else:
        w = pwl.astype(jnp.float32) + 2.0 * (y > 0.5).astype(jnp.float32)
    bce = jnp.maximum(x, 0.0) - x * y + jnp.log1p(jnp.exp(-jnp.abs(x)))
    return jnp.mean(bce * (w + 1.0))


if __name__ == "__main__":
    key = jax.random.PRNGKey(0)
    k1, k2, k3, k4, k5, k6 = jax.random.split(key, 6)

    # Case 1: [B, C, X, Y, Z] = [2, 2, 8, 16, 16] (8192 elems), bf16 logits,
    # explicit f32 pwl weight map.
    shape = (2, 2, 8, 16, 16)
    predicted = jax.random.normal(k1, shape, dtype=jnp.float32).astype(jnp.bfloat16)
    ground_truth = (jax.random.uniform(k2, shape) > 0.7).astype(jnp.float32)
    pwl = jax.random.uniform(k3, shape, dtype=jnp.float32) * 3.0

    out_pwl = jax.block_until_ready(
        cross_entropy_pixel(predicted, ground_truth, pwl, validate=True))
    ref_pwl = _reference(predicted, ground_truth, pwl)
    assert np.allclose(np.asarray(out_pwl), np.asarray(ref_pwl),
                       rtol=1e-5, atol=1e-5), (out_pwl, ref_pwl)

    # Case 2: pwl=None -> 2-input kernel variant (no ones tensor streamed).
    out_none = jax.block_until_ready(
        cross_entropy_pixel(predicted, ground_truth, None))
    ref_none = _reference(predicted, ground_truth, None)
    assert np.allclose(np.asarray(out_none), np.asarray(ref_none),
                       rtol=1e-5, atol=1e-5), (out_none, ref_none)

    # Case 3: ragged total (630 elems, not a multiple of 8*128) exercises the
    # pad + in-kernel mask path.
    shape2 = (1, 2, 5, 7, 9)
    p2 = jax.random.normal(k4, shape2, dtype=jnp.float32)
    g2 = (jax.random.uniform(k5, shape2) > 0.6).astype(jnp.float32)
    w2 = jax.random.uniform(k6, shape2, dtype=jnp.float32)
    out2 = jax.block_until_ready(cross_entropy_pixel(p2, g2, w2))
    ref2 = _reference(p2, g2, w2)
    assert np.allclose(np.asarray(out2), np.asarray(ref2),
                       rtol=1e-5, atol=1e-5), (out2, ref2)

    # TODO(synk): 'worst_z' (per-z-plane sum + sort + linspace**2 scaling) and
    # 'random' (data-dependent randint gather of pos/neg pixels) methods are not
    # implemented as Pallas kernels.
    print("KERNEL_OK")
</pallas_src>

<mosaic_0001>
module attributes {stable_mosaic.version = 11 : i64} {
  func.func @_ce_pixel_kernel(%arg0: i32, %arg1: i32, %arg2: memref<64x128xbf16, #tpu.memory_space<vmem>>, %arg3: memref<64x128xf32, #tpu.memory_space<vmem>>, %arg4: memref<64x128xf32, #tpu.memory_space<vmem>>, %arg5: memref<1x64x128xf32, #tpu.memory_space<vmem>>) attributes {dimension_semantics = [#tpu.dimension_semantics<parallel>, #tpu.dimension_semantics<arbitrary>], iteration_bounds = array<i64: 2, 1>, scalar_prefetch = 0 : i64, scratch_operands = 0 : i64, tpu.core_type = #tpu.core_type<tc>, window_params = [{transform_indices = @transform_0, window_bounds = array<i64: 64, 128>}, {transform_indices = @transform_1, window_bounds = array<i64: 64, 128>}, {transform_indices = @transform_2, window_bounds = array<i64: 64, 128>}, {transform_indices = @transform_3, window_bounds = array<i64: 1, 64, 128>}]} {
    %c0_i32 = arith.constant 0 : i32
    %0 = arith.cmpi eq, %arg1, %c0_i32 : i32
    %1 = arith.extui %0 : i1 to i32
    %c0_i32_0 = arith.constant 0 : i32
    %2 = arith.cmpi ne, %1, %c0_i32_0 : i32
    scf.if %2 {
      %cst_20 = arith.constant 0.000000e+00 : f32
      %53 = vector.broadcast %cst_20 : f32 to vector<64x128xf32>
      %c0_21 = arith.constant 0 : index
      %c0_22 = arith.constant 0 : index
      %c0_23 = arith.constant 0 : index
      %54 = vector.load %arg5[%c0_21, %c0_22, %c0_23] : memref<1x64x128xf32, #tpu.memory_space<vmem>>, vector<1x64x128xf32>
      %55 = vector.shape_cast %54 : vector<1x64x128xf32> to vector<64x128xf32>
      %56 = vector.shape_cast %53 : vector<64x128xf32> to vector<1x64x128xf32>
      tpu.vector_store %arg5[%c0_21, %c0_22, %c0_23], %56 {strides = array<i32>} : memref<1x64x128xf32, #tpu.memory_space<vmem>>, vector<1x64x128xf32>,
    } else {
    }
    %c1_i32 = arith.constant 1 : i32
    %3 = arith.muli %arg0, %c1_i32 : i32
    %4 = arith.addi %3, %arg1 : i32
    %c64_i32 = arith.constant 64 : i32
    %5 = arith.muli %4, %c64_i32 : i32
    %6 = tpu.iota {dimensions = array<i32: 0>} : vector<64x128xi32>
    %7 = tpu.iota {dimensions = array<i32: 1>} : vector<64x128xi32>
    %8 = vector.broadcast %5 : i32 to vector<64x128xi32>
    %9 = arith.addi %8, %6 : vector<64x128xi32>
    %c128_i32 = arith.constant 128 : i32
    %10 = vector.broadcast %c128_i32 : i32 to vector<64x128xi32>
    %11 = arith.muli %9, %10 : vector<64x128xi32>
    %12 = arith.addi %11, %7 : vector<64x128xi32>
    %c8192_i32 = arith.constant 8192 : i32
    %13 = vector.broadcast %c8192_i32 : i32 to vector<64x128xi32>
    %14 = arith.cmpi slt, %12, %13 : vector<64x128xi32>
    %c0 = arith.constant 0 : index
    %c0_1 = arith.constant 0 : index
    %15 = vector.load %arg2[%c0, %c0_1] : memref<64x128xbf16, #tpu.memory_space<vmem>>, vector<64x128xbf16>
    %16 = arith.extf %15 : vector<64x128xbf16> to vector<64x128xf32>
    %c0_2 = arith.constant 0 : index
    %c0_3 = arith.constant 0 : index
    %17 = vector.load %arg3[%c0_2, %c0_3] : memref<64x128xf32, #tpu.memory_space<vmem>>, vector<64x128xf32>
    %cst = arith.constant 0.000000e+00 : f32
    %18 = vector.broadcast %cst : f32 to vector<64x128xf32>
    %19 = arith.select %14, %16, %18 : vector<64x128xi1>, vector<64x128xf32>
    %cst_4 = arith.constant 0.000000e+00 : f32
    %20 = vector.broadcast %cst_4 : f32 to vector<64x128xf32>
    %21 = arith.select %14, %17, %20 : vector<64x128xi1>, vector<64x128xf32>
    %c0_5 = arith.constant 0 : index
    %c0_6 = arith.constant 0 : index
    %22 = vector.load %arg4[%c0_5, %c0_6] : memref<64x128xf32, #tpu.memory_space<vmem>>, vector<64x128xf32>
    %cst_7 = arith.constant 0.000000e+00 : f32
    %23 = vector.broadcast %cst_7 : f32 to vector<64x128xf32>
    %24 = arith.select %14, %22, %23 : vector<64x128xi1>, vector<64x128xf32>
    %cst_8 = arith.constant 5.000000e-01 : f32
    %25 = vector.broadcast %cst_8 : f32 to vector<64x128xf32>
    %26 = arith.cmpf ogt, %21, %25 : vector<64x128xf32>
    %27 = arith.extui %26 : vector<64x128xi1> to vector<64x128xi32>
    %28 = arith.sitofp %27 : vector<64x128xi32> to vector<64x128xf32>
    %cst_9 = arith.constant 2.000000e+00 : f32
    %29 = vector.broadcast %cst_9 : f32 to vector<64x128xf32>
    %30 = arith.mulf %29, %28 : vector<64x128xf32>
    %31 = arith.addf %24, %30 : vector<64x128xf32>
    %cst_10 = arith.constant 1.000000e+00 : f32
    %32 = vector.broadcast %cst_10 : f32 to vector<64x128xf32>
    %33 = arith.addf %31, %32 : vector<64x128xf32>
    %cst_11 = arith.constant 0.000000e+00 : f32
    %34 = vector.broadcast %cst_11 : f32 to vector<64x128xf32>
    %35 = arith.maximumf %19, %34 : vector<64x128xf32>
    %36 = arith.mulf %19, %21 : vector<64x128xf32>
    %37 = arith.subf %35, %36 : vector<64x128xf32>
    %38 = math.absf %19 : vector<64x128xf32>
    %cst_12 = arith.constant 0.000000e+00 : f32
    %39 = vector.broadcast %cst_12 : f32 to vector<64x128xf32>
    %40 = arith.subf %39, %38 : vector<64x128xf32>
    %41 = math.exp %40 : vector<64x128xf32>
    %42 = math.log1p %41 : vector<64x128xf32>
    %43 = arith.addf %37, %42 : vector<64x128xf32>
    %44 = arith.mulf %43, %33 : vector<64x128xf32>
    %cst_13 = arith.constant 0.000000e+00 : f32
    %45 = vector.broadcast %cst_13 : f32 to vector<64x128xf32>
    %46 = arith.select %14, %44, %45 : vector<64x128xi1>, vector<64x128xf32>
    %c0_14 = arith.constant 0 : index
    %c0_15 = arith.constant 0 : index
    %c0_16 = arith.constant 0 : index
    %47 = vector.load %arg5[%c0_14, %c0_15, %c0_16] : memref<1x64x128xf32, #tpu.memory_space<vmem>>, vector<1x64x128xf32>
    %48 = vector.shape_cast %47 : vector<1x64x128xf32> to vector<64x128xf32>
    %49 = arith.addf %48, %46 : vector<64x128xf32>
    %c0_17 = arith.constant 0 : index
    %c0_18 = arith.constant 0 : index
    %c0_19 = arith.constant 0 : index
    %50 = vector.load %arg5[%c0_17, %c0_18, %c0_19] : memref<1x64x128xf32, #tpu.memory_space<vmem>>, vector<1x64x128xf32>
    %51 = vector.shape_cast %50 : vector<1x64x128xf32> to vector<64x128xf32>
    %52 = vector.shape_cast %49 : vector<64x128xf32> to vector<1x64x128xf32>
    tpu.vector_store %arg5[%c0_17, %c0_18, %c0_19], %52 {strides = array<i32>} : memref<1x64x128xf32, #tpu.memory_space<vmem>>, vector<1x64x128xf32>,
    return
  }
  func.func @transform_0(%arg0: i32, %arg1: i32) -> (i32, i32) {
    %c1_i32 = arith.constant 1 : i32
    %0 = arith.muli %arg0, %c1_i32 : i32
    %1 = arith.addi %0, %arg1 : i32
    %c0_i32 = arith.constant 0 : i32
    %2 = arith.minsi %1, %c0_i32 : i32
    %c0_i32_0 = arith.constant 0 : i32
    %c0_i32_1 = arith.constant 0 : i32
    return %2, %c0_i32_0 : i32, i32
  }
  func.func @transform_1(%arg0: i32, %arg1: i32) -> (i32, i32) {
    %c1_i32 = arith.constant 1 : i32
    %0 = arith.muli %arg0, %c1_i32 : i32
    %1 = arith.addi %0, %arg1 : i32
    %c0_i32 = arith.constant 0 : i32
    %2 = arith.minsi %1, %c0_i32 : i32
    %c0_i32_0 = arith.constant 0 : i32
    %c0_i32_1 = arith.constant 0 : i32
    return %2, %c0_i32_0 : i32, i32
  }
  func.func @transform_2(%arg0: i32, %arg1: i32) -> (i32, i32) {
    %c1_i32 = arith.constant 1 : i32
    %0 = arith.muli %arg0, %c1_i32 : i32
    %1 = arith.addi %0, %arg1 : i32
    %c0_i32 = arith.constant 0 : i32
    %2 = arith.minsi %1, %c0_i32 : i32
    %c0_i32_0 = arith.constant 0 : i32
    %c0_i32_1 = arith.constant 0 : i32
    return %2, %c0_i32_0 : i32, i32
  }
  func.func @transform_3(%arg0: i32, %arg1: i32) -> (i32, i32, i32) {
    %c0_i32 = arith.constant 0 : i32
    %c0_i32_0 = arith.constant 0 : i32
    %c0_i32_1 = arith.constant 0 : i32
    return %arg0, %c0_i32, %c0_i32_0 : i32, i32, i32
  }
}

</mosaic_0001>

<llo_original>
// kernel: tpu_custom_call.1
$region0: #{tpu_custom_call.1}
  #allocation0 [shape = 'u32[]', space=smem, size = 0x4, offset = 0x4, fixed_abs, tag = 'smem constant byte address 0x4 - core index']
  #allocation1 [shape = 'u32[144,128]{1,0:T(1,128)}', space=vmem, size = 0x12000, scoped, tag = 'internal scratch']
  %s0 = inlined_call_operand.hbm [shape: bf16[64,128], index: 0, kind: input, shape index: {}]
  %s1 = inlined_call_operand.hbm [shape: f32[64,128], index: 1, kind: input, shape index: {}]
  %s2 = inlined_call_operand.hbm [shape: f32[64,128], index: 2, kind: input, shape index: {}]
  %s3 = inlined_call_operand.hbm [shape: f32[2,64,128], index: 3, kind: output, shape index: {}]
  %s4 = sld [smem:[#allocation0]]
  $region61: #{tpu_custom_call.1} parent=0
    _
  %s6 = ssub.s32 1, %s4
  %s7 = scalar_select 0, %s6, %s4
  $region1: #{tpu_custom_call.1} parent=0
    #allocation2 [shape = 'u8[32768]{0}', space=vmem, size = 0x8000, scoped, tag = 'input window, operand 0']
    #allocation3 [shape = 's32[2]{0}', space=sflag, size = 0x8, scoped, tag = 'scoped memory for tpu_custom_call.1']
    #allocation4 [shape = 's32[2]{0}', space=sflag, size = 0x8, scoped, tag = 'scoped memory for tpu_custom_call.1']
    #allocation5 [shape = 'u8[65536]{0}', space=vmem, size = 0x10000, scoped, tag = 'input window, operand 1']
    #allocation6 [shape = 's32[2]{0}', space=sflag, size = 0x8, scoped, tag = 'scoped memory for tpu_custom_call.1']
    #allocation7 [shape = 'u8[65536]{0}', space=vmem, size = 0x10000, scoped, tag = 'input window, operand 2']
    #allocation8 [shape = 'u8[65536]{0}', space=vmem, size = 0x10000, scoped, tag = 'output window, operand 0']
    %8 = vsyncpa [#allocation3], 0
    %s9 = scalar_lea.sflag [#allocation3], 1
    %10 = vsyncpa %s9, 0
    %11 = vsyncpa [#allocation6], 0
    %s12 = scalar_lea.sflag [#allocation6], 1
    %13 = vsyncpa %s12, 0
    %14 = vsyncpa [#allocation4], 0
    %s15 = scalar_lea.sflag [#allocation4], 1
    %16 = vsyncpa %s15, 0
    loop: start=0, step=1, limit=4
    $region2: #{tpu_custom_call.1} parent=1 // loop_pre_header
      _
    $region3: #{tpu_custom_call.1} parent=1 // loop_header
      %s18 = sphi 0, %s22
      %p19 = scmp.ge.s32.totalorder %s18, 4
      %s25 = sphi 0, %s37
      %s26 = sphi 0, %s33
      %s27 = sphi 0, %s25
      %s28 = sphi 0, %s26
      %s29 = sphi 0, %s27
      %s30 = sphi 0, %s28
      %s46 = sphi 0, %s48
      %s49 = sphi 0, %s46
      %s50 = sphi 0, %s49
      %s66 = sphi 0, %s50
      %s78 = sphi 0, %s80
      %s81 = sphi 0, %s78
      %s82 = sphi 0, %s81
      %s98 = sphi 0, %s82
      %s110 = sphi 0, %s112
      %s113 = sphi 0, %s110
      %s114 = sphi 0, %s113
      %s130 = sphi 0, %s114
      %s136 = sphi 0, %s138
      %s139 = sphi 0, %s136
      %s140 = sphi 0, %s139
      %s156 = sphi 0, %s140
    $region4: #{tpu_custom_call.1} parent=1 // loop_header_branch
      %21 = sbr.rel (%p19) target = $region8
    $region5: #{tpu_custom_call.1} parent=1 // loop_body
      %s23 = ssub.s32 %s18, 1
      %s24 = ssub.s32 %s18, 2
      %s31 = sadd.s32 1, %s26
      %p32 = scmp.ge.s32.totalorder %s31, 1
      %s33 = scalar_select %p32, 0, %s31
      %s34 = sadd.s32 1, %s25
      %s35 = scalar_select %p32, %s34, %s25
      %p36 = scmp.ge.s32.totalorder %s35, 2
      %s37 = scalar_select %p36, 0, %s35
      %s38 = sadd.s32 %s25, %s26
      %p39 = scmp.lt.s32.totalorder %s38, 0
      %s40 = scalar_select %p39, %s38, 0
      %s41 = sadd.s32 %s37, %s33
      %p42 = scmp.lt.s32.totalorder %s41, 0
      %s43 = scalar_select %p42, %s41, 0
      %s44 = ssub.s32 %s40, %s43
      %p45 = scmp.eq.s32.totalorder %s44, 0
      %s47 = sadd.s32 %s46, 1
      %s48 = scalar_select %p45, %s46, %s47
      %p51 = pneg %p45
      %p52 = scmp.eq.s32.totalorder %s18, 1
      %p53 = por %p51, %p52
      %p54 = scmp.ne.s32.totalorder %s46, %s49
      %p55 = scmp.eq.s32.totalorder %s18, 0
      %p56 = por %p54, %p55
      %p57 = scmp.ne.s32.totalorder %s46, %s49
      %p58 = scmp.eq.s32.totalorder %s23, 1
      %p59 = por %p57, %p58
      %p60 = scmp.ne.s32.totalorder %s49, %s50
      %p61 = scmp.eq.s32.totalorder %s23, 0
      %p62 = por %p60, %p61
      %p63 = scmp.ne.s32.totalorder %s49, %s50
      %p64 = scmp.eq.s32.totalorder %s24, 1
      %p65 = por %p63, %p64
      %p67 = scmp.ne.s32.totalorder %s50, %s66
      %p68 = scmp.eq.s32.totalorder %s24, 0
      %p69 = por %p67, %p68
      %s70 = sadd.s32 %s25, %s26
      %p71 = scmp.lt.s32.totalorder %s70, 0
      %s72 = scalar_select %p71, %s70, 0
      %s73 = sadd.s32 %s37, %s33
      %p74 = scmp.lt.s32.totalorder %s73, 0
      %s75 = scalar_select %p74, %s73, 0
      %s76 = ssub.s32 %s72, %s75
      %p77 = scmp.eq.s32.totalorder %s76, 0
      %s79 = sadd.s32 %s78, 1
      %s80 = scalar_select %p77, %s78, %s79
      %p83 = pneg %p77
      %p84 = scmp.eq.s32.totalorder %s18, 1
      %p85 = por %p83, %p84
      %p86 = scmp.ne.s32.totalorder %s78, %s81
      %p87 = scmp.eq.s32.totalorder %s18, 0
      %p88 = por %p86, %p87
      %p89 = scmp.ne.s32.totalorder %s78, %s81
      %p90 = scmp.eq.s32.totalorder %s23, 1
      %p91 = por %p89, %p90
      %p92 = scmp.ne.s32.totalorder %s81, %s82
      %p93 = scmp.eq.s32.totalorder %s23, 0
      %p94 = por %p92, %p93
      %p95 = scmp.ne.s32.totalorder %s81, %s82
      %p96 = scmp.eq.s32.totalorder %s24, 1
      %p97 = por %p95, %p96
      %p99 = scmp.ne.s32.totalorder %s82, %s98
      %p100 = scmp.eq.s32.totalorder %s24, 0
      %p101 = por %p99, %p100
      %s102 = sadd.s32 %s25, %s26
      %p103 = scmp.lt.s32.totalorder %s102, 0
      %s104 = scalar_select %p103, %s102, 0
      %s105 = sadd.s32 %s37, %s33
      %p106 = scmp.lt.s32.totalorder %s105, 0
      %s107 = scalar_select %p106, %s105, 0
      %s108 = ssub.s32 %s104, %s107
      %p109 = scmp.eq.s32.totalorder %s108, 0
      %s111 = sadd.s32 %s110, 1
      %s112 = scalar_select %p109, %s110, %s111
      %p115 = pneg %p109
      %p116 = scmp.eq.s32.totalorder %s18, 1
      %p117 = por %p115, %p116
      %p118 = scmp.ne.s32.totalorder %s110, %s113
      %p119 = scmp.eq.s32.totalorder %s18, 0
      %p120 = por %p118, %p119
      %p121 = scmp.ne.s32.totalorder %s110, %s113
      %p122 = scmp.eq.s32.totalorder %s23, 1
      %p123 = por %p121, %p122
      %p124 = scmp.ne.s32.totalorder %s113, %s114
      %p125 = scmp.eq.s32.totalorder %s23, 0
      %p126 = por %p124, %p125
      %p127 = scmp.ne.s32.totalorder %s113, %s114
      %p128 = scmp.eq.s32.totalorder %s24, 1
      %p129 = por %p127, %p128
      %p131 = scmp.ne.s32.totalorder %s114, %s130
      %p132 = scmp.eq.s32.totalorder %s24, 0
      %p133 = por %p131, %p132
      %s134 = ssub.s32 %s25, %s37
      %p135 = scmp.eq.s32.totalorder %s134, 0
      %s137 = sadd.s32 %s136, 1
      %s138 = scalar_select %p135, %s136, %s137
      %p141 = pneg %p135
      %p142 = scmp.eq.s32.totalorder %s18, 1
      %p143 = por %p141, %p142
      %p144 = scmp.ne.s32.totalorder %s136, %s139
      %p145 = scmp.eq.s32.totalorder %s18, 0
      %p146 = por %p144, %p145
      %p147 = scmp.ne.s32.totalorder %s136, %s139
      %p148 = scmp.eq.s32.totalorder %s23, 1
      %p149 = por %p147, %p148
      %p150 = scmp.ne.s32.totalorder %s139, %s140
      %p151 = scmp.eq.s32.totalorder %s23, 0
      %p152 = por %p150, %p151
      %p153 = scmp.ne.s32.totalorder %s139, %s140
      %p154 = scmp.eq.s32.totalorder %s24, 1
      %p155 = por %p153, %p154
      %p157 = scmp.ne.s32.totalorder %s140, %s156
      %p158 = scmp.eq.s32.totalorder %s24, 0
      %p159 = por %p157, %p158
      %p160 = scmp.le.s32.totalorder 1, %s18
      %p161 = scmp.lt.s32.totalorder %s18, 3
      %p162 = pnand %p160, %p161
      %p163 = pneg %p162
      // Predicated region
      $region9: #{tpu_custom_call.1} parent=5 // pred_check
        _
      $region10: #{tpu_custom_call.1} parent=5 // pred_check_branch
        %165 = sbr.rel (%p162) target = $region12
      $region11: #{tpu_custom_call.1} parent=5 // pred_region
        %s166 = ssub.s32 %s18, 1
      $region12: #{tpu_custom_call.1} parent=5 // pred_fallthru
        _
      %p167 = scmp.lt.s32.totalorder %s18, 2
      // Predicated region
      $region13: #{tpu_custom_call.1} parent=5 // pred_check
        %p168 = pneg %p167
      $region14: #{tpu_custom_call.1} parent=5 // pred_check_branch
        %170 = sbr.rel (%p168) target = $region16
      $region15: #{tpu_custom_call.1} parent=5 // pred_region
        // Predicated region
        $region17: #{tpu_custom_call.1} parent=15 // pred_check
          %p171 = pneg %p56
        $region18: #{tpu_custom_call.1} parent=15 // pred_check_branch
          %173 = sbr.rel (%p171) target = $region20
        $region19: #{tpu_custom_call.1} parent=15 // pred_region
          %s174 = sand.u32 %s46, 1
          %s175 = scalar_lea.sflag [#allocation3], %s174
          %s176 = sand.u32 %s46, 1
          %s177 = smul.addr %s176, 32
          %s178 = scalar_lea.vmem [#allocation2], %s177
          %s179 = sadd.s32 %s25, %s26
          %p180 = scmp.lt.s32.totalorder %s179, 0
          %s181 = scalar_select %p180, %s179, 0
          %s182 = smul.u32 8, %s181
          %s184 = ssub.s32 512, 512
          %185 = vsyncadd %s175, %s184
          %s186 = smul.addr %s182, 64
          %s187 = scalar_lea.hbm %s0, %s186
          %s188 = sshll.u32 %s178, 4
          %s189 = int_to_ptr.vmem [resolvable:$true] %s188
          %194 = dma.hbm_to_vmem [thread:$0]  %s187, 512, %s189, %s175, 64, 64, 4
        $region20: #{tpu_custom_call.1} parent=15 // pred_fallthru
          _
        // Predicated region
        $region21: #{tpu_custom_call.1} parent=15 // pred_check
          %p195 = pneg %p88
        $region22: #{tpu_custom_call.1} parent=15 // pred_check_branch
          %197 = sbr.rel (%p195) target = $region24
        $region23: #{tpu_custom_call.1} parent=15 // pred_region
          %s198 = sand.u32 %s18, 1
          %s199 = scalar_lea.sflag [#allocation6], %s198
          %s200 = sand.u32 %s78, 1
          %s201 = smul.addr %s200, 64
          %s202 = scalar_lea.vmem [#allocation5], %s201
          %s203 = sadd.s32 %s25, %s26
          %p204 = scmp.lt.s32.totalorder %s203, 0
          %s205 = scalar_select %p204, %s203, 0
          %s206 = smul.u32 8, %s205
          %s208 = ssub.s32 1024, 1024
          %209 = vsyncadd %s199, %s208
          %s210 = smul.addr %s206, 128
          %s211 = scalar_lea.hbm %s1, %s210
          %s212 = sshll.u32 %s202, 4
          %s213 = int_to_ptr.vmem [resolvable:$true] %s212
          %218 = dma.hbm_to_vmem [thread:$0]  %s211, 1024, %s213, %s199, 128, 128, 8
        $region24: #{tpu_custom_call.1} parent=15 // pred_fallthru
          _
        // Predicated region
        $region25: #{tpu_custom_call.1} parent=15 // pred_check
          %p219 = pneg %p120
        $region26: #{tpu_custom_call.1} parent=15 // pred_check_branch
          %221 = sbr.rel (%p219) target = $region28
        $region27: #{tpu_custom_call.1} parent=15 // pred_region
          %s222 = sand.u32 %s18, 1
          %s223 = scalar_lea.sflag [#allocation6], %s222
          %s224 = sand.u32 %s110, 1
          %s225 = smul.addr %s224, 64
          %s226 = scalar_lea.vmem [#allocation7], %s225
          %s227 = sadd.s32 %s25, %s26
          %p228 = scmp.lt.s32.totalorder %s227, 0
          %s229 = scalar_select %p228, %s227, 0
          %s230 = smul.u32 8, %s229
          %s232 = ssub.s32 1024, 1024
          %233 = vsyncadd %s223, %s232
          %s234 = smul.addr %s230, 128
          %s235 = scalar_lea.hbm %s2, %s234
          %s236 = sshll.u32 %s226, 4
          %s237 = int_to_ptr.vmem [resolvable:$true] %s236
          %242 = dma.hbm_to_vmem [thread:$0]  %s235, 1024, %s237, %s223, 128, 128, 8
        $region28: #{tpu_custom_call.1} parent=15 // pred_fallthru
          _
      $region16: #{tpu_custom_call.1} parent=5 // pred_fallthru
        _
      %p243 = scmp.le.s32.totalorder 1, %s18
      %p244 = scmp.lt.s32.totalorder %s18, 3
      %p245 = pnand %p243, %p244
      %p246 = pneg %p245
      // Predicated region
      $region29: #{tpu_custom_call.1} parent=5 // pred_check
        _
      $region30: #{tpu_custom_call.1} parent=5 // pred_check_branch
        %248 = sbr.rel (%p245) target = $region32
      $region31: #{tpu_custom_call.1} parent=5 // pred_region
        %s249 = ssub.s32 %s18, 1
        %s250 = sand.u32 %s49, 1
        %s251 = scalar_lea.sflag [#allocation3], %s250
        %s252 = sand.u32 %s49, 1
        %s253 = smul.addr %s252, 32
        %s254 = scalar_lea.vmem [#allocation2], %s253
        // Predicated region
        $region33: #{tpu_custom_call.1} parent=31 // pred_check
          %p255 = pneg %p62
        $region34: #{tpu_custom_call.1} parent=31 // pred_check_branch
          %257 = sbr.rel (%p255) target = $region36
        $region35: #{tpu_custom_call.1} parent=31 // pred_region
          %258 = dma.done %s251, 512
        $region36: #{tpu_custom_call.1} parent=31 // pred_fallthru
          _
        %s259 = sand.u32 %s23, 1
        %s260 = scalar_lea.sflag [#allocation6], %s259
        %s261 = sand.u32 %s81, 1
        %s262 = smul.addr %s261, 64
        %s263 = scalar_lea.vmem [#allocation5], %s262
        // Predicated region
        $region37: #{tpu_custom_call.1} parent=31 // pred_check
          %p264 = pneg %p94
        $region38: #{tpu_custom_call.1} parent=31 // pred_check_branch
          %266 = sbr.rel (%p264) target = $region40
        $region39: #{tpu_custom_call.1} parent=31 // pred_region
          %267 = dma.done %s260, 1024
        $region40: #{tpu_custom_call.1} parent=31 // pred_fallthru
          _
        %s268 = sand.u32 %s23, 1
        %s269 = scalar_lea.sflag [#allocation6], %s268
        %s270 = sand.u32 %s113, 1
        %s271 = smul.addr %s270, 64
        %s272 = scalar_lea.vmem [#allocation7], %s271
        // Predicated region
        $region41: #{tpu_custom_call.1} parent=31 // pred_check
          %p273 = pneg %p126
        $region42: #{tpu_custom_call.1} parent=31 // pred_check_branch
          %275 = sbr.rel (%p273) target = $region44
        $region43: #{tpu_custom_call.1} parent=31 // pred_region
          %276 = dma.done %s269, 1024
        $region44: #{tpu_custom_call.1} parent=31 // pred_fallthru
          _
        %s277 = sand.u32 %s49, 1
        %s278 = scalar_lea.sflag [#allocation3], %s277
        %s279 = sand.u32 %s49, 1
        %s280 = smul.addr %s279, 32
        %s281 = scalar_lea.vmem [#allocation2], %s280
        %p282 = pneg %p62
        %p283 = pneg %p59
        %s284 = sand.u32 %s23, 1
        %s285 = scalar_lea.sflag [#allocation6], %s284
        %s286 = sand.u32 %s81, 1
        %s287 = smul.addr %s286, 64
        %s288 = scalar_lea.vmem [#allocation5], %s287
        %p289 = pneg %p94
        %p290 = pneg %p91
        %s291 = sand.u32 %s23, 1
        %s292 = scalar_lea.sflag [#allocation6], %s291
        %s293 = sand.u32 %s113, 1
        %s294 = smul.addr %s293, 64
        %s295 = scalar_lea.vmem [#allocation7], %s294
        %p296 = pneg %p126
        %p297 = pneg %p123
        %p298 = pneg %p152
        %p299 = pneg %p149
        %s300 = sand.u32 %s139, 1
        %s301 = scalar_lea.sflag [#allocation4], %s300
        %s302 = sand.u32 %s139, 1
        %s303 = smul.addr %s302, 64
        %s304 = scalar_lea.vmem [#allocation8], %s303
        %s305 = sadd.s32 %s27, %s28
        %p306 = scmp.lt.s32.totalorder %s305, 0
        %s307 = scalar_select %p306, %s305, 0
        %s308 = smul.u32 8, %s307
        %s309 = sadd.s32 %s27, %s28
        %p310 = scmp.lt.s32.totalorder %s309, 0
        %s311 = scalar_select %p310, %s309, 0
        %s312 = smul.u32 8, %s311
        %s313 = sadd.s32 %s27, %s28
        %p314 = scmp.lt.s32.totalorder %s313, 0
        %s315 = scalar_select %p314, %s313, 0
        %s316 = smul.u32 8, %s315
        %p317 = scmp.eq.s32.totalorder %s28, 0
        // Predicated region
        $region45: #{tpu_custom_call.1} parent=31 // pred_check
          %p318 = pneg %p317
        $region46: #{tpu_custom_call.1} parent=31 // pred_check_branch
          %320 = sbr.rel (%p318) target = $region48
        $region47: #{tpu_custom_call.1} parent=31 // pred_region
          %321 = vst [vmem:[%s304] sm:$0xff] 0.0
          %322 = vst [vmem:[%s304 + $0x8] sm:$0xff] 0.0
          %323 = vst [vmem:[%s304 + $0x10] sm:$0xff] 0.0
          %324 = vst [vmem:[%s304 + $0x18] sm:$0xff] 0.0
          %325 = vst [vmem:[%s304 + $0x20] sm:$0xff] 0.0
          %326 = vst [vmem:[%s304 + $0x28] sm:$0xff] 0.0
          %327 = vst [vmem:[%s304 + $0x30] sm:$0xff] 0.0
          %328 = vst [vmem:[%s304 + $0x38] sm:$0xff] 0.0
        $region48: #{tpu_custom_call.1} parent=31 // pred_fallthru
          _
        %s329 = sadd.s32 %s27, %s28
        %s330 = smul.u32 %s329, 64
        %v331 = vlaneseq
        %v332 = vshrl.u32 %v331, 7
        %v333 = vadd.s32 %v332, 8
        %v334 = vadd.s32 %v332, 16
        %v335 = vadd.s32 %v332, 24
        %v336 = vadd.s32 %v332, 32
        %v337 = vadd.s32 %v332, 40
        %v338 = vadd.s32 %v332, 48
        %v339 = vadd.s32 %v332, 56
        %v340 = vlaneseq
        %v341 = vand.u32 %v340, 127
        %v342 = vstv %s330
        %v343 = vadd.s32 %v342, %v332
        %v344 = vadd.s32 %v342, %v333
        %v345 = vadd.s32 %v342, %v334
        %v346 = vadd.s32 %v342, %v335
        %v347 = vadd.s32 %v342, %v336
        %v348 = vadd.s32 %v342, %v337
        %v349 = vadd.s32 %v342, %v338
        %v350 = vadd.s32 %v342, %v339
        %v351 = vmul.u32 %v343, 128
        %v352 = vmul.u32 %v344, 128
        %v353 = vmul.u32 %v345, 128
        %v354 = vmul.u32 %v346, 128
        %v355 = vmul.u32 %v347, 128
        %v356 = vmul.u32 %v348, 128
        %v357 = vmul.u32 %v349, 128
        %v358 = vmul.u32 %v350, 128
        %v359 = vadd.s32 %v351, %v341
        %v360 = vadd.s32 %v352, %v341
        %v361 = vadd.s32 %v353, %v341
        %v362 = vadd.s32 %v354, %v341
        %v363 = vadd.s32 %v355, %v341
        %v364 = vadd.s32 %v356, %v341
        %v365 = vadd.s32 %v357, %v341
        %v366 = vadd.s32 %v358, %v341
        %vm367 = vcmp.lt.s32.totalorder %v359, 8192
        %vm368 = vcmp.lt.s32.totalorder %v360, 8192
        %vm369 = vcmp.lt.s32.totalorder %v361, 8192
        %vm370 = vcmp.lt.s32.totalorder %v362, 8192
        %vm371 = vcmp.lt.s32.totalorder %v363, 8192
        %vm372 = vcmp.lt.s32.totalorder %v364, 8192
        %vm373 = vcmp.lt.s32.totalorder %v365, 8192
        %vm374 = vcmp.lt.s32.totalorder %v366, 8192
        %v375 = vld [vmem:[%s254] sm:$0xf]
        %v376 = vld [vmem:[%s254 + $0x4] sm:$0xf]
        %v377 = vld [vmem:[%s254 + $0x8] sm:$0xf]
        %v378 = vld [vmem:[%s254 + $0xc] sm:$0xf]
        %v379 = vld [vmem:[%s254 + $0x10] sm:$0xf]
        %v380 = vld [vmem:[%s254 + $0x14] sm:$0xf]
        %v381 = vld [vmem:[%s254 + $0x18] sm:$0xf]
        %v382 = vld [vmem:[%s254 + $0x1c] sm:$0xf]
        %v383 = vunpack.c.l.bf16 %v375
        %v384 = vunpack.c.l.bf16 %v376
        %v385 = vunpack.c.l.bf16 %v377
        %v386 = vunpack.c.l.bf16 %v378
        %v387 = vunpack.c.l.bf16 %v379
        %v388 = vunpack.c.l.bf16 %v380
        %v389 = vunpack.c.l.bf16 %v381
        %v390 = vunpack.c.l.bf16 %v382
        %v391 = vld [vmem:[%s263] sm:$0xff]
        %v392 = vld [vmem:[%s263 + $0x8] sm:$0xff]
        %v393 = vld [vmem:[%s263 + $0x10] sm:$0xff]
        %v394 = vld [vmem:[%s263 + $0x18] sm:$0xff]
        %v395 = vld [vmem:[%s263 + $0x20] sm:$0xff]
        %v396 = vld [vmem:[%s263 + $0x28] sm:$0xff]
        %v397 = vld [vmem:[%s263 + $0x30] sm:$0xff]
        %v398 = vld [vmem:[%s263 + $0x38] sm:$0xff]
        %v399 = vsel %vm367, %v383, 0.0
        %v400 = vsel %vm368, %v384, 0.0
        %v401 = vsel %vm369, %v385, 0.0
        %v402 = vsel %vm370, %v386, 0.0
        %v403 = vsel %vm371, %v387, 0.0
        %v404 = vsel %vm372, %v388, 0.0
        %v405 = vsel %vm373, %v389, 0.0
        %v406 = vsel %vm374, %v390, 0.0
        %v407 = vsel %vm367, %v391, 0.0
        %v408 = vsel %vm368, %v392, 0.0
        %v409 = vsel %vm369, %v393, 0.0
        %v410 = vsel %vm370, %v394, 0.0
        %v411 = vsel %vm371, %v395, 0.0
        %v412 = vsel %vm372, %v396, 0.0
        %v413 = vsel %vm373, %v397, 0.0
        %v414 = vsel %vm374, %v398, 0.0
        %v415 = vld [vmem:[%s272] sm:$0xff]
        %v416 = vld [vmem:[%s272 + $0x8] sm:$0xff]
        %v417 = vld [vmem:[%s272 + $0x10] sm:$0xff]
        %v418 = vld [vmem:[%s272 + $0x18] sm:$0xff]
        %v419 = vld [vmem:[%s272 + $0x20] sm:$0xff]
        %v420 = vld [vmem:[%s272 + $0x28] sm:$0xff]
        %v421 = vld [vmem:[%s272 + $0x30] sm:$0xff]
        %v422 = vld [vmem:[%s272 + $0x38] sm:$0xff]
        %v423 = vsel %vm367, %v415, 0.0
        %v424 = vsel %vm368, %v416, 0.0
        %v425 = vsel %vm369, %v417, 0.0
        %v426 = vsel %vm370, %v418, 0.0
        %v427 = vsel %vm371, %v419, 0.0
        %v428 = vsel %vm372, %v420, 0.0
        %v429 = vsel %vm373, %v421, 0.0
        %v430 = vsel %vm374, %v422, 0.0
        %vm431 = vcmp.gt.f32.partialorder %v407, 0.5
        %vm432 = vcmp.gt.f32.partialorder %v408, 0.5
        %vm433 = vcmp.gt.f32.partialorder %v409, 0.5
        %vm434 = vcmp.gt.f32.partialorder %v410, 0.5
        %vm435 = vcmp.gt.f32.partialorder %v411, 0.5
        %vm436 = vcmp.gt.f32.partialorder %v412, 0.5
        %vm437 = vcmp.gt.f32.partialorder %v413, 0.5
        %vm438 = vcmp.gt.f32.partialorder %v414, 0.5
        %v439 = vsel %vm431, 1, 0
        %v440 = vsel %vm432, 1, 0
        %v441 = vsel %vm433, 1, 0
        %v442 = vsel %vm434, 1, 0
        %v443 = vsel %vm435, 1, 0
        %v444 = vsel %vm436, 1, 0
        %v445 = vsel %vm437, 1, 0
        %v446 = vsel %vm438, 1, 0
        %v447 = vcvt.s32.f32 %v439
        %v448 = vcvt.s32.f32 %v440
        %v449 = vcvt.s32.f32 %v441
        %v450 = vcvt.s32.f32 %v442
        %v451 = vcvt.s32.f32 %v443
        %v452 = vcvt.s32.f32 %v444
        %v453 = vcvt.s32.f32 %v445
        %v454 = vcvt.s32.f32 %v446
        %v455 = vmul.f32 %v447, 2.0
        %v456 = vmul.f32 %v448, 2.0
        %v457 = vmul.f32 %v449, 2.0
        %v458 = vmul.f32 %v450, 2.0
        %v459 = vmul.f32 %v451, 2.0
        %v460 = vmul.f32 %v452, 2.0
        %v461 = vmul.f32 %v453, 2.0
        %v462 = vmul.f32 %v454, 2.0
        %v463 = vadd.f32 %v423, %v455
        %v464 = vadd.f32 %v424, %v456
        %v465 = vadd.f32 %v425, %v457
        %v466 = vadd.f32 %v426, %v458
        %v467 = vadd.f32 %v427, %v459
        %v468 = vadd.f32 %v428, %v460
        %v469 = vadd.f32 %v429, %v461
        %v470 = vadd.f32 %v430, %v462
        %v471 = vadd.f32 %v463, 1.0
        %v472 = vadd.f32 %v464, 1.0
        %v473 = vadd.f32 %v465, 1.0
        %v474 = vadd.f32 %v466, 1.0
        %v475 = vadd.f32 %v467, 1.0
        %v476 = vadd.f32 %v468, 1.0
        %v477 = vadd.f32 %v469, 1.0
        %v478 = vadd.f32 %v470, 1.0
        %v479 = vmax.f32 %v399, 0.0
        %v480 = vmax.f32 %v400, 0.0
        %v481 = vmax.f32 %v401, 0.0
        %v482 = vmax.f32 %v402, 0.0
        %v483 = vmax.f32 %v403, 0.0
        %v484 = vmax.f32 %v404, 0.0
        %v485 = vmax.f32 %v405, 0.0
        %v486 = vmax.f32 %v406, 0.0
        %v487 = vmul.f32 %v399, %v407
        %v488 = vmul.f32 %v400, %v408
        %v489 = vmul.f32 %v401, %v409
        %v490 = vmul.f32 %v402, %v410
        %v491 = vmul.f32 %v403, %v411
        %v492 = vmul.f32 %v404, %v412
        %v493 = vmul.f32 %v405, %v413
        %v494 = vmul.f32 %v406, %v414
        %v495 = vsub.f32 %v479, %v487
        %v496 = vsub.f32 %v480, %v488
        %v497 = vsub.f32 %v481, %v489
        %v498 = vsub.f32 %v482, %v490
        %v499 = vsub.f32 %v483, %v491
        %v500 = vsub.f32 %v484, %v492
        %v501 = vsub.f32 %v485, %v493
        %v502 = vsub.f32 %v486, %v494
        %v503 = vand.u32 2147483647, %v399
        %v504 = vand.u32 2147483647, %v400
        %v505 = vand.u32 2147483647, %v401
        %v506 = vand.u32 2147483647, %v402
        %v507 = vand.u32 2147483647, %v403
        %v508 = vand.u32 2147483647, %v404
        %v509 = vand.u32 2147483647, %v405
        %v510 = vand.u32 2147483647, %v406
        %v511 = vsub.f32 0.0, %v503
        %v512 = vsub.f32 0.0, %v504
        %v513 = vsub.f32 0.0, %v505
        %v514 = vsub.f32 0.0, %v506
        %v515 = vsub.f32 0.0, %v507
        %v516 = vsub.f32 0.0, %v508
        %v517 = vsub.f32 0.0, %v509
        %v518 = vsub.f32 0.0, %v510
        %v519 = vmul.f32 %v511, 1.442695
        %v520 = vpow.pop %v519
        %v521 = vmul.f32 %v512, 1.442695
        %v522 = vpow.pop %v521
        %v523 = vmul.f32 %v513, 1.442695
        %v524 = vpow.pop %v523
        %v525 = vmul.f32 %v514, 1.442695
        %v526 = vpow.pop %v525
        %v527 = vmul.f32 %v515, 1.442695
        %v528 = vpow.pop %v527
        %v529 = vmul.f32 %v516, 1.442695
        %v530 = vpow.pop %v529
        %v531 = vmul.f32 %v517, 1.442695
        %v532 = vpow.pop %v531
        %v533 = vmul.f32 %v518, 1.442695
        %v534 = vpow.pop %v533
        %v535 = vadd.f32 %v520, 1.0
        %v536 = vlog2.pop %v535
        %v537 = vmul.f32 %v536, 0.6931472
        %v538 = vmul.f32 -0.5, %v520
        %v539 = vadd.f32 %v538, 1.0
        %v540 = vmul.f32 %v539, %v520
        %v541 = vand.u32 2147483647, %v520
        %vm542 = vcmp.lt.f32.partialorder %v541, 0.0004427343
        %v543 = vsel %vm542, %v540, %v537
        %v544 = vadd.f32 %v522, 1.0
        %v545 = vlog2.pop %v544
        %v546 = vmul.f32 %v545, 0.6931472
        %v547 = vmul.f32 -0.5, %v522
        %v548 = vadd.f32 %v547, 1.0
        %v549 = vmul.f32 %v548, %v522
        %v550 = vand.u32 2147483647, %v522
        %vm551 = vcmp.lt.f32.partialorder %v550, 0.0004427343
        %v552 = vsel %vm551, %v549, %v546
        %v553 = vadd.f32 %v524, 1.0
        %v554 = vlog2.pop %v553
        %v555 = vmul.f32 %v554, 0.6931472
        %v556 = vmul.f32 -0.5, %v524
        %v557 = vadd.f32 %v556, 1.0
        %v558 = vmul.f32 %v557, %v524
        %v559 = vand.u32 2147483647, %v524
        %vm560 = vcmp.lt.f32.partialorder %v559, 0.0004427343
        %v561 = vsel %vm560, %v558, %v555
        %v562 = vadd.f32 %v526, 1.0
        %v563 = vlog2.pop %v562
        %v564 = vmul.f32 %v563, 0.6931472
        %v565 = vmul.f32 -0.5, %v526
        %v566 = vadd.f32 %v565, 1.0
        %v567 = vmul.f32 %v566, %v526
        %v568 = vand.u32 2147483647, %v526
        %vm569 = vcmp.lt.f32.partialorder %v568, 0.0004427343
        %v570 = vsel %vm569, %v567, %v564
        %v571 = vadd.f32 %v528, 1.0
        %v572 = vlog2.pop %v571
        %v573 = vmul.f32 %v572, 0.6931472
        %v574 = vmul.f32 -0.5, %v528
        %v575 = vadd.f32 %v574, 1.0
        %v576 = vmul.f32 %v575, %v528
        %v577 = vand.u32 2147483647, %v528
        %vm578 = vcmp.lt.f32.partialorder %v577, 0.0004427343
        %v579 = vsel %vm578, %v576, %v573
        %v580 = vadd.f32 %v530, 1.0
        %v581 = vlog2.pop %v580
        %v582 = vmul.f32 %v581, 0.6931472
        %v583 = vmul.f32 -0.5, %v530
        %v584 = vadd.f32 %v583, 1.0
        %v585 = vmul.f32 %v584, %v530
        %v586 = vand.u32 2147483647, %v530
        %vm587 = vcmp.lt.f32.partialorder %v586, 0.0004427343
        %v588 = vsel %vm587, %v585, %v582
        %v589 = vadd.f32 %v532, 1.0
        %v590 = vlog2.pop %v589
        %v591 = vmul.f32 %v590, 0.6931472
        %v592 = vmul.f32 -0.5, %v532
        %v593 = vadd.f32 %v592, 1.0
        %v594 = vmul.f32 %v593, %v532
        %v595 = vand.u32 2147483647, %v532
        %vm596 = vcmp.lt.f32.partialorder %v595, 0.0004427343
        %v597 = vsel %vm596, %v594, %v591
        %v598 = vadd.f32 %v534, 1.0
        %v599 = vlog2.pop %v598
        %v600 = vmul.f32 %v599, 0.6931472
        %v601 = vmul.f32 -0.5, %v534
        %v602 = vadd.f32 %v601, 1.0
        %v603 = vmul.f32 %v602, %v534
        %v604 = vand.u32 2147483647, %v534
        %vm605 = vcmp.lt.f32.partialorder %v604, 0.0004427343
        %v606 = vsel %vm605, %v603, %v600
        %v607 = vadd.f32 %v495, %v543
        %v608 = vadd.f32 %v496, %v552
        %v609 = vadd.f32 %v497, %v561
        %v610 = vadd.f32 %v498, %v570
        %v611 = vadd.f32 %v499, %v579
        %v612 = vadd.f32 %v500, %v588
        %v613 = vadd.f32 %v501, %v597
        %v614 = vadd.f32 %v502, %v606
        %v615 = vmul.f32 %v607, %v471
        %v616 = vmul.f32 %v608, %v472
        %v617 = vmul.f32 %v609, %v473
        %v618 = vmul.f32 %v610, %v474
        %v619 = vmul.f32 %v611, %v475
        %v620 = vmul.f32 %v612, %v476
        %v621 = vmul.f32 %v613, %v477
        %v622 = vmul.f32 %v614, %v478
        %v623 = vsel %vm367, %v615, 0.0
        %v624 = vsel %vm368, %v616, 0.0
        %v625 = vsel %vm369, %v617, 0.0
        %v626 = vsel %vm370, %v618, 0.0
        %v627 = vsel %vm371, %v619, 0.0
        %v628 = vsel %vm372, %v620, 0.0
        %v629 = vsel %vm373, %v621, 0.0
        %v630 = vsel %vm374, %v622, 0.0
        %v631 = vld [vmem:[%s304] sm:$0xff]
        %v632 = vld [vmem:[%s304 + $0x8] sm:$0xff]
        %v633 = vld [vmem:[%s304 + $0x10] sm:$0xff]
        %v634 = vld [vmem:[%s304 + $0x18] sm:$0xff]
        %v635 = vld [vmem:[%s304 + $0x20] sm:$0xff]
        %v636 = vld [vmem:[%s304 + $0x28] sm:$0xff]
        %v637 = vld [vmem:[%s304 + $0x30] sm:$0xff]
        %v638 = vld [vmem:[%s304 + $0x38] sm:$0xff]
        %v639 = vadd.f32 %v631, %v623
        %v640 = vadd.f32 %v632, %v624
        %v641 = vadd.f32 %v633, %v625
        %v642 = vadd.f32 %v634, %v626
        %v643 = vadd.f32 %v635, %v627
        %v644 = vadd.f32 %v636, %v628
        %v645 = vadd.f32 %v637, %v629
        %v646 = vadd.f32 %v638, %v630
        %647 = vst [vmem:[%s304] sm:$0xff] %v639
        %648 = vst [vmem:[%s304 + $0x8] sm:$0xff] %v640
        %649 = vst [vmem:[%s304 + $0x10] sm:$0xff] %v641
        %650 = vst [vmem:[%s304 + $0x18] sm:$0xff] %v642
        %651 = vst [vmem:[%s304 + $0x20] sm:$0xff] %v643
        %652 = vst [vmem:[%s304 + $0x28] sm:$0xff] %v644
        %653 = vst [vmem:[%s304 + $0x30] sm:$0xff] %v645
        %654 = vst [vmem:[%s304 + $0x38] sm:$0xff] %v646
        %s655 = sand.u32 %s139, 1
        %s656 = scalar_lea.sflag [#allocation4], %s655
        %s657 = sand.u32 %s139, 1
        %s658 = smul.addr %s657, 64
        %s659 = scalar_lea.vmem [#allocation8], %s658
        // Predicated region
        $region49: #{tpu_custom_call.1} parent=31 // pred_check
          %p660 = pneg %p149
        $region50: #{tpu_custom_call.1} parent=31 // pred_check_branch
          %662 = sbr.rel (%p660) target = $region52
        $region51: #{tpu_custom_call.1} parent=31 // pred_region
          %s664 = ssub.s32 1024, 1024
          %665 = vsyncadd %s656, %s664
          %s666 = smul.addr %s27, 8
          %s667 = smul.addr %s666, 128
          %s668 = scalar_lea.hbm %s3, %s667
          %s669 = sshll.u32 %s659, 4
          %s670 = int_to_ptr.vmem [resolvable:$true] %s669
          %675 = dma.vmem_to_hbm [thread:$0]  %s670, 1024, %s668, %s656, 128, 128, 8
        $region52: #{tpu_custom_call.1} parent=31 // pred_fallthru
          _
      $region32: #{tpu_custom_call.1} parent=5 // pred_fallthru
        _
      %p676 = scmp.le.s32.totalorder 2, %s18
      // Predicated region
      $region53: #{tpu_custom_call.1} parent=5 // pred_check
        %p677 = pneg %p676
      $region54: #{tpu_custom_call.1} parent=5 // pred_check_branch
        %679 = sbr.rel (%p677) target = $region56
      $region55: #{tpu_custom_call.1} parent=5 // pred_region
        %s680 = ssub.s32 %s18, 2
        // Predicated region
        $region57: #{tpu_custom_call.1} parent=55 // pred_check
          %p681 = pneg %p155
        $region58: #{tpu_custom_call.1} parent=55 // pred_check_branch
          %683 = sbr.rel (%p681) target = $region60
        $region59: #{tpu_custom_call.1} parent=55 // pred_region
          %s684 = sand.u32 %s140, 1
          %s685 = scalar_lea.sflag [#allocation4], %s684
          %s686 = sand.u32 %s140, 1
          %s687 = smul.addr %s686, 64
          %s688 = scalar_lea.vmem [#allocation8], %s687
          %689 = dma.done %s685, 1024
        $region60: #{tpu_custom_call.1} parent=55 // pred_fallthru
          _
      $region56: #{tpu_custom_call.1} parent=5 // pred_fallthru
        _
    $region6: #{tpu_custom_call.1} parent=1 // loop_footer
      %s22 = sadd.s32 1, %s18
    $region7: #{tpu_custom_call.1} parent=1 // loop_footer_branch
      %17 = sbr.rel target = $region3
    $region8: #{tpu_custom_call.1} parent=1 // loop_exit
      _
    %690 = vsyncpa [#allocation3], 1
    %s691 = scalar_lea.sflag [#allocation3], 1
    %692 = vsyncpa %s691, 1
    %693 = vsyncpa [#allocation6], 1
    %s694 = scalar_lea.sflag [#allocation6], 1
    %695 = vsyncpa %s694, 1
    %696 = vsyncpa [#allocation4], 1
    %s697 = scalar_lea.sflag [#allocation4], 1
    %698 = vsyncpa %s697, 1

</llo_original>
